<compile_context>
chip_gen: v7x
topology: tpu7x:2x2x1
jax: 0.10.0
libtpu: 0.0.40
codegen_flags: <defaults>
</compile_context>

<pallas_src>
import math

import jax
import jax.numpy as jnp
from jax import lax
from jax.experimental import pallas as pl
from jax.experimental.pallas import tpu as pltpu

N_HEADS = 4
BN_EPS = 1e-5


# ----------------------------------- kernel -----------------------------------

def fusion_encoder_kernel(x_h5_ref, x_sc_ref, ws_ref, wqkv_ref, wh_ref,
                          out_ref, att_ref):
    f32 = jnp.float32
    h5_in = x_h5_ref.shape[1]
    sc_in = x_sc_ref.shape[1]
    hidden = ws_ref.shape[1]
    head_dim = hidden // N_HEADS

    # ---- two input streams: Linear (+ folded BatchNorm) -> ReLU  (Dropout = id) ----
    # ws slab rows: [0:h5_in] w_h5', [h5_in:h5_in+sc_in] w_sc', then b_h5', b_sc'.
    b_h5 = ws_ref[h5_in + sc_in:h5_in + sc_in + 1, :]
    b_sc = ws_ref[h5_in + sc_in + 1:h5_in + sc_in + 2, :]
    h5 = jnp.maximum(
        jnp.dot(x_h5_ref[...], ws_ref[0:h5_in, :], preferred_element_type=f32) + b_h5,
        0.0)
    sc = jnp.maximum(
        jnp.dot(x_sc_ref[...], ws_ref[h5_in:h5_in + sc_in, :],
                preferred_element_type=f32) + b_sc,
        0.0)

    # ---- fused Q/K/V projection: Q <- h5 (macro), K/V <- sc (micro) ----
    # wqkv slab rows: [0:hidden] = [wq/sqrt(d) | 0 | 0], [hidden:2h] = [0 | wk | wv],
    # row 2h = [bq/sqrt(d) | bk | bv].  Result: qkv[:, 0:h]=Q, [h:2h]=K, [2h:3h]=V.
    qkv = (jnp.dot(h5, wqkv_ref[0:hidden, :], preferred_element_type=f32)
           + jnp.dot(sc, wqkv_ref[hidden:2 * hidden, :], preferred_element_type=f32)
           + wqkv_ref[2 * hidden:2 * hidden + 1, :])

    # ---- multi-head attention over the batch-as-sequence axis (static unroll) ----
    for h in range(N_HEADS):
        lo = h * head_dim
        qh = qkv[:, lo:lo + head_dim]                               # (N, hd), pre-scaled
        kh = qkv[:, hidden + lo:hidden + lo + head_dim]             # (N, hd)
        vh = qkv[:, 2 * hidden + lo:2 * hidden + lo + head_dim]     # (N, hd)
        # scores = (Q / sqrt(d)) @ K^T, contracting last dims (no explicit transpose)
        s = lax.dot_general(qh, kh, (((1,), (1,)), ((), ())),
                            preferred_element_type=f32)             # (N, N)
        s = s - jnp.max(s, axis=-1, keepdims=True)
        e = jnp.exp(s)
        p = e * pl.reciprocal(jnp.sum(e, axis=-1, keepdims=True), approx=True)
        # write this head's output straight into its lane range of the scratch
        att_ref[:, lo:lo + head_dim] = jnp.dot(p, vh, preferred_element_type=f32)

    attended = att_ref[...]                                          # (N, hidden)

    # ---- fusion head on concat([h5, out_proj(attended)]), out_proj folded in ----
    # wh slab rows: [0:hidden] = wf_h5, [hidden:2h] = wo @ wf_attn,
    # row 2h = bf + bo @ wf_attn.
    fused = (jnp.dot(h5, wh_ref[0:hidden, :], preferred_element_type=f32)
             + jnp.dot(attended, wh_ref[hidden:2 * hidden, :],
                       preferred_element_type=f32)
             + wh_ref[2 * hidden:2 * hidden + 1, :])
    out_ref[...] = jnp.maximum(fused, 0.0)


def fusion_encoder(x_h5, x_sc, packed):
    """Single grid point; everything (≈20 KB) lives in VMEM."""
    n = x_h5.shape[0]
    hidden = packed["w_streams"].shape[1]
    out_dim = packed["w_head"].shape[1]
    args = [x_h5, x_sc, packed["w_streams"], packed["w_qkv"], packed["w_head"]]
    return pl.pallas_call(
        fusion_encoder_kernel,
        out_shape=jax.ShapeDtypeStruct((n, out_dim), jnp.float32),
        in_specs=[pl.BlockSpec(memory_space=pltpu.MemorySpace.VMEM) for _ in args],
        out_specs=pl.BlockSpec(memory_space=pltpu.MemorySpace.VMEM),
        scratch_shapes=[pltpu.VMEM((n, hidden), jnp.float32)],  # per-head attn outputs
    )(*args)


# --------------------------- parameter construction ---------------------------

def _linear_init(key, fan_in, fan_out):
    """Mimic torch.nn.Linear default init: U(-1/sqrt(fan_in), 1/sqrt(fan_in))."""
    kw, kb = jax.random.split(key)
    bound = 1.0 / math.sqrt(fan_in)
    w = jax.random.uniform(kw, (fan_in, fan_out), jnp.float32, -bound, bound)
    b = jax.random.uniform(kb, (1, fan_out), jnp.float32, -bound, bound)
    return w, b


def make_params(key, h5_in_dim, sc_in_dim, hidden_dim, fused_out_dim):
    """Raw (PyTorch-style) parameters, including eval-mode BN running stats."""
    keys = jax.random.split(key, 12)
    p = {}
    p["w_h5"], p["b_h5"] = _linear_init(keys[0], h5_in_dim, hidden_dim)
    p["w_sc"], p["b_sc"] = _linear_init(keys[1], sc_in_dim, hidden_dim)

    def bn_fold(k):
        kg, kb, km, kv = jax.random.split(k, 4)
        gamma = 1.0 + 0.1 * jax.random.normal(kg, (1, hidden_dim), jnp.float32)
        beta = 0.1 * jax.random.normal(kb, (1, hidden_dim), jnp.float32)
        r_mean = 0.05 * jax.random.normal(km, (1, hidden_dim), jnp.float32)
        r_var = 1.0 + 0.1 * jax.random.uniform(kv, (1, hidden_dim), jnp.float32)
        scale = gamma / jnp.sqrt(r_var + BN_EPS)
        shift = beta - r_mean * scale
        return scale, shift

    p["s_h5"], p["t_h5"] = bn_fold(keys[2])
    p["s_sc"], p["t_sc"] = bn_fold(keys[3])

    p["wq"], p["bq"] = _linear_init(keys[4], hidden_dim, hidden_dim)
    p["wk"], p["bk"] = _linear_init(keys[5], hidden_dim, hidden_dim)
    p["wv"], p["bv"] = _linear_init(keys[6], hidden_dim, hidden_dim)
    p["wo"], p["bo"] = _linear_init(keys[7], hidden_dim, hidden_dim)

    wf, bf = _linear_init(keys[8], 2 * hidden_dim, fused_out_dim)
    p["wf_h5"] = wf[:hidden_dim]
    p["wf_attn"] = wf[hidden_dim:]
    p["bf"] = bf
    return p


def pack_params(p):
    """Host-side folding + packing into 3 row-stacked slabs for the kernel."""
    hidden = p["wq"].shape[0]
    inv_sqrt_d = 1.0 / math.sqrt(hidden // N_HEADS)

    # (1) fold eval-mode BatchNorm into the stream linears.
    w_h5 = p["w_h5"] * p["s_h5"]
    b_h5 = p["b_h5"] * p["s_h5"] + p["t_h5"]
    w_sc = p["w_sc"] * p["s_sc"]
    b_sc = p["b_sc"] * p["s_sc"] + p["t_sc"]
    w_streams = jnp.concatenate([w_h5, w_sc, b_h5, b_sc], axis=0)   # (h5+sc+2, hidden)

    # (2) fold 1/sqrt(head_dim) into Q; (3) fuse Q/K/V into one block weight slab.
    z = jnp.zeros((hidden, hidden), jnp.float32)
    row_q = jnp.concatenate([p["wq"] * inv_sqrt_d, z, z], axis=1)    # (hidden, 3*hidden)
    row_kv = jnp.concatenate([z, p["wk"], p["wv"]], axis=1)          # (hidden, 3*hidden)
    b_qkv = jnp.concatenate([p["bq"] * inv_sqrt_d, p["bk"], p["bv"]], axis=1)
    w_qkv = jnp.concatenate([row_q, row_kv, b_qkv], axis=0)          # (2*hidden+1, 3*hidden)

    # (4) fold the attention out_proj into the fusion head's attention half.
    wf_att = p["wo"] @ p["wf_attn"]                                  # (hidden, out)
    b_head = p["bf"] + p["bo"] @ p["wf_attn"]                        # (1, out)
    w_head = jnp.concatenate([p["wf_h5"], wf_att, b_head], axis=0)   # (2*hidden+1, out)

    return {"w_streams": w_streams, "w_qkv": w_qkv, "w_head": w_head}


# ------------------------------ plain-JAX reference ---------------------------

def reference_forward(x_h5, x_sc, p):
    """Unfolded math, matching the PyTorch module (eval mode) op-for-op."""
    h5 = jnp.maximum((x_h5 @ p["w_h5"] + p["b_h5"]) * p["s_h5"] + p["t_h5"], 0.0)
    sc = jnp.maximum((x_sc @ p["w_sc"] + p["b_sc"]) * p["s_sc"] + p["t_sc"], 0.0)
    q = h5 @ p["wq"] + p["bq"]
    k = sc @ p["wk"] + p["bk"]
    v = sc @ p["wv"] + p["bv"]
    n, hidden = q.shape
    hd = hidden // N_HEADS
    qh = q.reshape(n, N_HEADS, hd).transpose(1, 0, 2)
    kh = k.reshape(n, N_HEADS, hd).transpose(1, 0, 2)
    vh = v.reshape(n, N_HEADS, hd).transpose(1, 0, 2)
    s = jnp.einsum("hnd,hmd->hnm", qh, kh) / math.sqrt(hd)
    w = jax.nn.softmax(s, axis=-1)
    att = jnp.einsum("hnm,hmd->hnd", w, vh).transpose(1, 0, 2).reshape(n, hidden)
    att = att @ p["wo"] + p["bo"]
    fused = h5 @ p["wf_h5"] + att @ p["wf_attn"] + p["bf"]
    return jnp.maximum(fused, 0.0)


if __name__ == "__main__":
    N, H5_IN, SC_IN, HIDDEN, OUT = 8, 16, 24, 32, 16

    key = jax.random.PRNGKey(0)
    k_x1, k_x2, k_p = jax.random.split(key, 3)
    x_h5 = jax.random.normal(k_x1, (N, H5_IN), jnp.float32)
    x_sc = jax.random.normal(k_x2, (N, SC_IN), jnp.float32)
    params = make_params(k_p, H5_IN, SC_IN, HIDDEN, OUT)
    packed = pack_params(params)

    out = fusion_encoder(x_h5, x_sc, packed)
    out = jax.block_until_ready(out)

    ref = reference_forward(x_h5, x_sc, params)
    assert out.shape == (N, OUT)
    # Tolerance 1e-3: host-side weight folding (re-association) and the EUP
    # approximate reciprocal in the softmax introduce ~1e-4-level deviations.
    assert jnp.allclose(out, ref, atol=1e-3, rtol=1e-3), "mismatch vs JAX reference"

    print("KERNEL_OK")
</pallas_src>

<mosaic_0001>
module attributes {stable_mosaic.version = 11 : i64} {
  func.func @fusion_encoder_kernel(%arg0: memref<8x16xf32, #tpu.memory_space<vmem>>, %arg1: memref<8x24xf32, #tpu.memory_space<vmem>>, %arg2: memref<42x32xf32, #tpu.memory_space<vmem>>, %arg3: memref<65x96xf32, #tpu.memory_space<vmem>>, %arg4: memref<65x16xf32, #tpu.memory_space<vmem>>, %arg5: memref<8x16xf32, #tpu.memory_space<vmem>>, %arg6: memref<8x32xf32, #tpu.memory_space<vmem>>) attributes {dimension_semantics = [], scalar_prefetch = 0 : i64, scratch_operands = 1 : i64, tpu.core_type = #tpu.core_type<tc>} {
    %c40 = arith.constant 40 : index
    %c0 = arith.constant 0 : index
    %0 = vector.load %arg2[%c40, %c0] : memref<42x32xf32, #tpu.memory_space<vmem>>, vector<1x32xf32>
    %c41 = arith.constant 41 : index
    %c0_0 = arith.constant 0 : index
    %1 = vector.load %arg2[%c41, %c0_0] : memref<42x32xf32, #tpu.memory_space<vmem>>, vector<1x32xf32>
    %c0_1 = arith.constant 0 : index
    %c0_2 = arith.constant 0 : index
    %2 = vector.load %arg0[%c0_1, %c0_2] : memref<8x16xf32, #tpu.memory_space<vmem>>, vector<8x16xf32>
    %c0_3 = arith.constant 0 : index
    %c0_4 = arith.constant 0 : index
    %3 = vector.load %arg2[%c0_3, %c0_4] : memref<42x32xf32, #tpu.memory_space<vmem>>, vector<16x32xf32>
    %cst = arith.constant dense<0.000000e+00> : vector<8x32xf32>
    %4 = tpu.matmul %2, %3, %cst {dimension_numbers = #tpu.dot_dimension_numbers<[1], [0], [0], [1], [0, 0, 1, 1], [], []>} : vector<8x16xf32>, vector<16x32xf32>, vector<8x32xf32> -> vector<8x32xf32>
    %5 = vector.broadcast %0 : vector<1x32xf32> to vector<8x32xf32>
    %6 = arith.addf %4, %5 : vector<8x32xf32>
    %cst_5 = arith.constant 0.000000e+00 : f32
    %7 = vector.broadcast %cst_5 : f32 to vector<8x32xf32>
    %8 = arith.maximumf %6, %7 : vector<8x32xf32>
    %c0_6 = arith.constant 0 : index
    %c0_7 = arith.constant 0 : index
    %9 = vector.load %arg1[%c0_6, %c0_7] : memref<8x24xf32, #tpu.memory_space<vmem>>, vector<8x24xf32>
    %c16 = arith.constant 16 : index
    %c0_8 = arith.constant 0 : index
    %10 = vector.load %arg2[%c16, %c0_8] : memref<42x32xf32, #tpu.memory_space<vmem>>, vector<24x32xf32>
    %cst_9 = arith.constant dense<0.000000e+00> : vector<8x32xf32>
    %11 = tpu.matmul %9, %10, %cst_9 {dimension_numbers = #tpu.dot_dimension_numbers<[1], [0], [0], [1], [0, 0, 1, 1], [], []>} : vector<8x24xf32>, vector<24x32xf32>, vector<8x32xf32> -> vector<8x32xf32>
    %12 = vector.broadcast %1 : vector<1x32xf32> to vector<8x32xf32>
    %13 = arith.addf %11, %12 : vector<8x32xf32>
    %cst_10 = arith.constant 0.000000e+00 : f32
    %14 = vector.broadcast %cst_10 : f32 to vector<8x32xf32>
    %15 = arith.maximumf %13, %14 : vector<8x32xf32>
    %c0_11 = arith.constant 0 : index
    %c0_12 = arith.constant 0 : index
    %16 = vector.load %arg3[%c0_11, %c0_12] : memref<65x96xf32, #tpu.memory_space<vmem>>, vector<32x96xf32>
    %cst_13 = arith.constant dense<0.000000e+00> : vector<8x96xf32>
    %17 = tpu.matmul %8, %16, %cst_13 {dimension_numbers = #tpu.dot_dimension_numbers<[1], [0], [0], [1], [0, 0, 1, 1], [], []>} : vector<8x32xf32>, vector<32x96xf32>, vector<8x96xf32> -> vector<8x96xf32>
    %c32 = arith.constant 32 : index
    %c0_14 = arith.constant 0 : index
    %18 = vector.load %arg3[%c32, %c0_14] : memref<65x96xf32, #tpu.memory_space<vmem>>, vector<32x96xf32>
    %cst_15 = arith.constant dense<0.000000e+00> : vector<8x96xf32>
    %19 = tpu.matmul %15, %18, %cst_15 {dimension_numbers = #tpu.dot_dimension_numbers<[1], [0], [0], [1], [0, 0, 1, 1], [], []>} : vector<8x32xf32>, vector<32x96xf32>, vector<8x96xf32> -> vector<8x96xf32>
    %20 = arith.addf %17, %19 : vector<8x96xf32>
    %c64 = arith.constant 64 : index
    %c0_16 = arith.constant 0 : index
    %21 = vector.load %arg3[%c64, %c0_16] : memref<65x96xf32, #tpu.memory_space<vmem>>, vector<1x96xf32>
    %22 = vector.broadcast %21 : vector<1x96xf32> to vector<8x96xf32>
    %23 = arith.addf %20, %22 : vector<8x96xf32>
    %24 = vector.extract_strided_slice %23 {offsets = [0, 0], sizes = [8, 8], strides = [1, 1]} : vector<8x96xf32> to vector<8x8xf32>
    %25 = vector.extract_strided_slice %23 {offsets = [0, 32], sizes = [8, 8], strides = [1, 1]} : vector<8x96xf32> to vector<8x8xf32>
    %26 = vector.extract_strided_slice %23 {offsets = [0, 64], sizes = [8, 8], strides = [1, 1]} : vector<8x96xf32> to vector<8x8xf32>
    %cst_17 = arith.constant dense<0.000000e+00> : vector<8x8xf32>
    %27 = tpu.matmul %24, %25, %cst_17 {dimension_numbers = #tpu.dot_dimension_numbers<[1], [1], [0], [0], [0, 0, 1, 0], [], []>} : vector<8x8xf32>, vector<8x8xf32>, vector<8x8xf32> -> vector<8x8xf32>
    %cst_18 = arith.constant dense<0xFF800000> : vector<8xf32>
    %28 = vector.multi_reduction <maximumf>, %27, %cst_18 [1] : vector<8x8xf32> to vector<8xf32>
    %29 = vector.shape_cast %28 : vector<8xf32> to vector<8x1xf32>
    %30 = vector.broadcast %29 : vector<8x1xf32> to vector<8x8xf32>
    %31 = arith.subf %27, %30 : vector<8x8xf32>
    %32 = math.exp %31 : vector<8x8xf32>
    %cst_19 = arith.constant dense<0.000000e+00> : vector<8xf32>
    %33 = vector.multi_reduction <add>, %32, %cst_19 [1] : vector<8x8xf32> to vector<8xf32>
    %34 = vector.shape_cast %33 : vector<8xf32> to vector<8x1xf32>
    %35 = tpu.reciprocal %34 {approx = true} : vector<8x1xf32> -> vector<8x1xf32>
    %36 = vector.broadcast %35 : vector<8x1xf32> to vector<8x8xf32>
    %37 = arith.mulf %32, %36 : vector<8x8xf32>
    %cst_20 = arith.constant dense<0.000000e+00> : vector<8x8xf32>
    %38 = tpu.matmul %37, %26, %cst_20 {dimension_numbers = #tpu.dot_dimension_numbers<[1], [0], [0], [1], [0, 0, 1, 1], [], []>} : vector<8x8xf32>, vector<8x8xf32>, vector<8x8xf32> -> vector<8x8xf32>
    %c0_21 = arith.constant 0 : index
    %c0_22 = arith.constant 0 : index
    %39 = vector.load %arg6[%c0_21, %c0_22] : memref<8x32xf32, #tpu.memory_space<vmem>>, vector<8x8xf32>
    tpu.vector_store %arg6[%c0_21, %c0_22], %38 {strides = array<i32>} : memref<8x32xf32, #tpu.memory_space<vmem>>, vector<8x8xf32>,
    %40 = vector.extract_strided_slice %23 {offsets = [0, 8], sizes = [8, 8], strides = [1, 1]} : vector<8x96xf32> to vector<8x8xf32>
    %41 = vector.extract_strided_slice %23 {offsets = [0, 40], sizes = [8, 8], strides = [1, 1]} : vector<8x96xf32> to vector<8x8xf32>
    %42 = vector.extract_strided_slice %23 {offsets = [0, 72], sizes = [8, 8], strides = [1, 1]} : vector<8x96xf32> to vector<8x8xf32>
    %cst_23 = arith.constant dense<0.000000e+00> : vector<8x8xf32>
    %43 = tpu.matmul %40, %41, %cst_23 {dimension_numbers = #tpu.dot_dimension_numbers<[1], [1], [0], [0], [0, 0, 1, 0], [], []>} : vector<8x8xf32>, vector<8x8xf32>, vector<8x8xf32> -> vector<8x8xf32>
    %cst_24 = arith.constant dense<0xFF800000> : vector<8xf32>
    %44 = vector.multi_reduction <maximumf>, %43, %cst_24 [1] : vector<8x8xf32> to vector<8xf32>
    %45 = vector.shape_cast %44 : vector<8xf32> to vector<8x1xf32>
    %46 = vector.broadcast %45 : vector<8x1xf32> to vector<8x8xf32>
    %47 = arith.subf %43, %46 : vector<8x8xf32>
    %48 = math.exp %47 : vector<8x8xf32>
    %cst_25 = arith.constant dense<0.000000e+00> : vector<8xf32>
    %49 = vector.multi_reduction <add>, %48, %cst_25 [1] : vector<8x8xf32> to vector<8xf32>
    %50 = vector.shape_cast %49 : vector<8xf32> to vector<8x1xf32>
    %51 = tpu.reciprocal %50 {approx = true} : vector<8x1xf32> -> vector<8x1xf32>
    %52 = vector.broadcast %51 : vector<8x1xf32> to vector<8x8xf32>
    %53 = arith.mulf %48, %52 : vector<8x8xf32>
    %cst_26 = arith.constant dense<0.000000e+00> : vector<8x8xf32>
    %54 = tpu.matmul %53, %42, %cst_26 {dimension_numbers = #tpu.dot_dimension_numbers<[1], [0], [0], [1], [0, 0, 1, 1], [], []>} : vector<8x8xf32>, vector<8x8xf32>, vector<8x8xf32> -> vector<8x8xf32>
    %c0_27 = arith.constant 0 : index
    %c8 = arith.constant 8 : index
    %55 = vector.load %arg6[%c0_27, %c8] : memref<8x32xf32, #tpu.memory_space<vmem>>, vector<8x8xf32>
    tpu.vector_store %arg6[%c0_27, %c8], %54 {strides = array<i32>} : memref<8x32xf32, #tpu.memory_space<vmem>>, vector<8x8xf32>,
    %56 = vector.extract_strided_slice %23 {offsets = [0, 16], sizes = [8, 8], strides = [1, 1]} : vector<8x96xf32> to vector<8x8xf32>
    %57 = vector.extract_strided_slice %23 {offsets = [0, 48], sizes = [8, 8], strides = [1, 1]} : vector<8x96xf32> to vector<8x8xf32>
    %58 = vector.extract_strided_slice %23 {offsets = [0, 80], sizes = [8, 8], strides = [1, 1]} : vector<8x96xf32> to vector<8x8xf32>
    %cst_28 = arith.constant dense<0.000000e+00> : vector<8x8xf32>
    %59 = tpu.matmul %56, %57, %cst_28 {dimension_numbers = #tpu.dot_dimension_numbers<[1], [1], [0], [0], [0, 0, 1, 0], [], []>} : vector<8x8xf32>, vector<8x8xf32>, vector<8x8xf32> -> vector<8x8xf32>
    %cst_29 = arith.constant dense<0xFF800000> : vector<8xf32>
    %60 = vector.multi_reduction <maximumf>, %59, %cst_29 [1] : vector<8x8xf32> to vector<8xf32>
    %61 = vector.shape_cast %60 : vector<8xf32> to vector<8x1xf32>
    %62 = vector.broadcast %61 : vector<8x1xf32> to vector<8x8xf32>
    %63 = arith.subf %59, %62 : vector<8x8xf32>
    %64 = math.exp %63 : vector<8x8xf32>
    %cst_30 = arith.constant dense<0.000000e+00> : vector<8xf32>
    %65 = vector.multi_reduction <add>, %64, %cst_30 [1] : vector<8x8xf32> to vector<8xf32>
    %66 = vector.shape_cast %65 : vector<8xf32> to vector<8x1xf32>
    %67 = tpu.reciprocal %66 {approx = true} : vector<8x1xf32> -> vector<8x1xf32>
    %68 = vector.broadcast %67 : vector<8x1xf32> to vector<8x8xf32>
    %69 = arith.mulf %64, %68 : vector<8x8xf32>
    %cst_31 = arith.constant dense<0.000000e+00> : vector<8x8xf32>
    %70 = tpu.matmul %69, %58, %cst_31 {dimension_numbers = #tpu.dot_dimension_numbers<[1], [0], [0], [1], [0, 0, 1, 1], [], []>} : vector<8x8xf32>, vector<8x8xf32>, vector<8x8xf32> -> vector<8x8xf32>
    %c0_32 = arith.constant 0 : index
    %c16_33 = arith.constant 16 : index
    %71 = vector.load %arg6[%c0_32, %c16_33] : memref<8x32xf32, #tpu.memory_space<vmem>>, vector<8x8xf32>
    tpu.vector_store %arg6[%c0_32, %c16_33], %70 {strides = array<i32>} : memref<8x32xf32, #tpu.memory_space<vmem>>, vector<8x8xf32>,
    %72 = vector.extract_strided_slice %23 {offsets = [0, 24], sizes = [8, 8], strides = [1, 1]} : vector<8x96xf32> to vector<8x8xf32>
    %73 = vector.extract_strided_slice %23 {offsets = [0, 56], sizes = [8, 8], strides = [1, 1]} : vector<8x96xf32> to vector<8x8xf32>
    %74 = vector.extract_strided_slice %23 {offsets = [0, 88], sizes = [8, 8], strides = [1, 1]} : vector<8x96xf32> to vector<8x8xf32>
    %cst_34 = arith.constant dense<0.000000e+00> : vector<8x8xf32>
    %75 = tpu.matmul %72, %73, %cst_34 {dimension_numbers = #tpu.dot_dimension_numbers<[1], [1], [0], [0], [0, 0, 1, 0], [], []>} : vector<8x8xf32>, vector<8x8xf32>, vector<8x8xf32> -> vector<8x8xf32>
    %cst_35 = arith.constant dense<0xFF800000> : vector<8xf32>
    %76 = vector.multi_reduction <maximumf>, %75, %cst_35 [1] : vector<8x8xf32> to vector<8xf32>
    %77 = vector.shape_cast %76 : vector<8xf32> to vector<8x1xf32>
    %78 = vector.broadcast %77 : vector<8x1xf32> to vector<8x8xf32>
    %79 = arith.subf %75, %78 : vector<8x8xf32>
    %80 = math.exp %79 : vector<8x8xf32>
    %cst_36 = arith.constant dense<0.000000e+00> : vector<8xf32>
    %81 = vector.multi_reduction <add>, %80, %cst_36 [1] : vector<8x8xf32> to vector<8xf32>
    %82 = vector.shape_cast %81 : vector<8xf32> to vector<8x1xf32>
    %83 = tpu.reciprocal %82 {approx = true} : vector<8x1xf32> -> vector<8x1xf32>
    %84 = vector.broadcast %83 : vector<8x1xf32> to vector<8x8xf32>
    %85 = arith.mulf %80, %84 : vector<8x8xf32>
    %cst_37 = arith.constant dense<0.000000e+00> : vector<8x8xf32>
    %86 = tpu.matmul %85, %74, %cst_37 {dimension_numbers = #tpu.dot_dimension_numbers<[1], [0], [0], [1], [0, 0, 1, 1], [], []>} : vector<8x8xf32>, vector<8x8xf32>, vector<8x8xf32> -> vector<8x8xf32>
    %c0_38 = arith.constant 0 : index
    %c24 = arith.constant 24 : index
    %87 = vector.load %arg6[%c0_38, %c24] : memref<8x32xf32, #tpu.memory_space<vmem>>, vector<8x8xf32>
    tpu.vector_store %arg6[%c0_38, %c24], %86 {strides = array<i32>} : memref<8x32xf32, #tpu.memory_space<vmem>>, vector<8x8xf32>,
    %c0_39 = arith.constant 0 : index
    %c0_40 = arith.constant 0 : index
    %88 = vector.load %arg6[%c0_39, %c0_40] : memref<8x32xf32, #tpu.memory_space<vmem>>, vector<8x32xf32>
    %c0_41 = arith.constant 0 : index
    %c0_42 = arith.constant 0 : index
    %89 = vector.load %arg4[%c0_41, %c0_42] : memref<65x16xf32, #tpu.memory_space<vmem>>, vector<32x16xf32>
    %cst_43 = arith.constant dense<0.000000e+00> : vector<8x16xf32>
    %90 = tpu.matmul %8, %89, %cst_43 {dimension_numbers = #tpu.dot_dimension_numbers<[1], [0], [0], [1], [0, 0, 1, 1], [], []>} : vector<8x32xf32>, vector<32x16xf32>, vector<8x16xf32> -> vector<8x16xf32>
    %c32_44 = arith.constant 32 : index
    %c0_45 = arith.constant 0 : index
    %91 = vector.load %arg4[%c32_44, %c0_45] : memref<65x16xf32, #tpu.memory_space<vmem>>, vector<32x16xf32>
    %cst_46 = arith.constant dense<0.000000e+00> : vector<8x16xf32>
    %92 = tpu.matmul %88, %91, %cst_46 {dimension_numbers = #tpu.dot_dimension_numbers<[1], [0], [0], [1], [0, 0, 1, 1], [], []>} : vector<8x32xf32>, vector<32x16xf32>, vector<8x16xf32> -> vector<8x16xf32>
    %93 = arith.addf %90, %92 : vector<8x16xf32>
    %c64_47 = arith.constant 64 : index
    %c0_48 = arith.constant 0 : index
    %94 = vector.load %arg4[%c64_47, %c0_48] : memref<65x16xf32, #tpu.memory_space<vmem>>, vector<1x16xf32>
    %95 = vector.broadcast %94 : vector<1x16xf32> to vector<8x16xf32>
    %96 = arith.addf %93, %95 : vector<8x16xf32>
    %cst_49 = arith.constant 0.000000e+00 : f32
    %97 = vector.broadcast %cst_49 : f32 to vector<8x16xf32>
    %98 = arith.maximumf %96, %97 : vector<8x16xf32>
    %c0_50 = arith.constant 0 : index
    %c0_51 = arith.constant 0 : index
    %99 = vector.load %arg5[%c0_50, %c0_51] : memref<8x16xf32, #tpu.memory_space<vmem>>, vector<8x16xf32>
    tpu.vector_store %arg5[%c0_50, %c0_51], %98 {strides = array<i32>} : memref<8x16xf32, #tpu.memory_space<vmem>>, vector<8x16xf32>,
    return
  }
}

</mosaic_0001>

<llo_original>
// kernel: tpu_custom_call.1
$region0: #{tpu_custom_call.1}
  #allocation0 [shape = 'u32[]', space=smem, size = 0x4, offset = 0x4, fixed_abs, tag = 'smem constant byte address 0x4 - core index']
  #allocation1 [shape = 'u32[144,128]{1,0:T(1,128)}', space=vmem, size = 0x12000, scoped, tag = 'internal scratch']
  #allocation2 [shape = 'f32[8,32]{1,0:T(8,128)}', space=vmem, size = 0x1000, scoped, tag = 'scratch operand']
  %s0 = inlined_call_operand.vmem [shape: f32[8,16], index: 0, kind: input, shape index: {}]
  %s1 = inlined_call_operand.vmem [shape: f32[8,24], index: 1, kind: input, shape index: {}]
  %s2 = inlined_call_operand.vmem [shape: f32[42,32], index: 2, kind: input, shape index: {}]
  %s3 = inlined_call_operand.vmem [shape: f32[65,96], index: 3, kind: input, shape index: {}]
  %s4 = inlined_call_operand.vmem [shape: f32[65,16], index: 4, kind: input, shape index: {}]
  %s5 = inlined_call_operand.hbm [shape: f32[8,16], index: 5, kind: output, shape index: {}]
  %s6 = sld [smem:[#allocation0]]
  $region30: #{tpu_custom_call.1} parent=0
    _
  %s8 = ssub.s32 1, %s6
  %s9 = scalar_select 0, %s8, %s6
  $region1: #{tpu_custom_call.1} parent=0
    #allocation3 [shape = 'u8[4096]{0}', space=vmem, size = 0x1000, scoped, tag = 'output window, operand 0, single buffered']
    #allocation4 [shape = 's32[1]{0}', space=sflag, size = 0x4, scoped, tag = 'scoped memory for tpu_custom_call.1']
    %10 = vsyncpa [#allocation4], 0
    // Predicated region
    $region2: #{tpu_custom_call.1} parent=1 // pred_check
      _
    $region3: #{tpu_custom_call.1} parent=1 // pred_check_branch
      %12 = sbr.rel (0) target = $region5
    $region4: #{tpu_custom_call.1} parent=1 // pred_region
      _
    $region5: #{tpu_custom_call.1} parent=1 // pred_fallthru
      _
    // Predicated region
    $region6: #{tpu_custom_call.1} parent=1 // pred_check
      _
    $region7: #{tpu_custom_call.1} parent=1 // pred_check_branch
      %14 = sbr.rel (0) target = $region9
    $region8: #{tpu_custom_call.1} parent=1 // pred_region
      _
    $region9: #{tpu_custom_call.1} parent=1 // pred_fallthru
      _
    // Predicated region
    $region10: #{tpu_custom_call.1} parent=1 // pred_check
      _
    $region11: #{tpu_custom_call.1} parent=1 // pred_check_branch
      %16 = sbr.rel (0) target = $region13
    $region12: #{tpu_custom_call.1} parent=1 // pred_region
      _
    $region13: #{tpu_custom_call.1} parent=1 // pred_fallthru
      _
    // Predicated region
    $region14: #{tpu_custom_call.1} parent=1 // pred_check
      _
    $region15: #{tpu_custom_call.1} parent=1 // pred_check_branch
      %18 = sbr.rel (0) target = $region17
    $region16: #{tpu_custom_call.1} parent=1 // pred_region
      _
    $region17: #{tpu_custom_call.1} parent=1 // pred_fallthru
      _
    // Predicated region
    $region18: #{tpu_custom_call.1} parent=1 // pred_check
      _
    $region19: #{tpu_custom_call.1} parent=1 // pred_check_branch
      %20 = sbr.rel (0) target = $region21
    $region20: #{tpu_custom_call.1} parent=1 // pred_region
      _
    $region21: #{tpu_custom_call.1} parent=1 // pred_fallthru
      _
    %v21 = vld [vmem:[%s2 + $0x28] sm:$0x1]
    %v22 = vld [vmem:[%s2 + $0x29] sm:$0x1]
    %v23 = vld [vmem:[%s0] sm:$0xff]
    %v24 = vld [vmem:[%s2] sm:$0xff]
    %v25 = vld [vmem:[%s2 + $0x8] sm:$0xff]
    %v26 = vlaneseq
    %v27 = vshrl.u32 %v26, 7
    %v28 = vsub.s32 0, %v27
    %v29 = vrot.slane %v21, %v28
    %vm30 = vcmask 130048
    %v32 = vsel %vm30, %v23, 0
    %34 = vmatprep.subr.mxu0 0.0
    %35 = vmatpush1.msra.mxu0 %v24
    %36 = vmatprep.subr.mxu0 0.0
    %37 = vmatpush1.msra.mxu0 %v25
    %38 = vmatprep.subr.mxu0 0.0
    %39 = vmatpush1.msra.mxu0 0.0
    %40 = vmatprep.subr.mxu0 0.0
    %41 = vmatpush1.msra.mxu0 0.0
    %42 = vmatprep.subr.mxu0 0.0
    %43 = vmatpush1.msra.mxu0 0.0
    %44 = vmatprep.subr.mxu0 0.0
    %45 = vmatpush1.msra.mxu0 0.0
    %46 = vmatprep.subr.mxu0 0.0
    %47 = vmatpush1.msra.mxu0 0.0
    %48 = vmatprep.subr.mxu0 0.0
    %49 = vmatpush1.msra.mxu0 0.0
    %50 = vmatprep.subr.mxu0 0.0
    %51 = vmatpush1.msra.mxu0 0.0
    %52 = vmatprep.subr.mxu0 0.0
    %53 = vmatpush1.msra.mxu0 0.0
    %54 = vmatprep.subr.mxu0 0.0
    %55 = vmatpush1.msra.mxu0 0.0
    %56 = vmatprep.subr.mxu0 0.0
    %57 = vmatpush1.msra.mxu0 0.0
    %58 = vmatprep.subr.mxu0 0.0
    %59 = vmatpush1.msra.mxu0 0.0
    %60 = vmatprep.subr.mxu0 0.0
    %61 = vmatpush1.msra.mxu0 0.0
    %62 = vmatprep.subr.mxu0 0.0
    %63 = vmatpush1.msra.mxu0 0.0
    %64 = vmatprep.subr.mxu0 0.0
    %65 = vmatpush1.msra.mxu0 0.0
    %66 = vmatprep.subr.mxu0 0.0
    %67 = vmatpush1.msra.mxu0 0.0
    %68 = vmatprep.subr.mxu0 0.0
    %69 = vmatpush1.msra.mxu0 0.0
    %70 = vmatprep.subr.mxu0 0.0
    %71 = vmatpush1.msra.mxu0 0.0
    %72 = vmatprep.subr.mxu0 0.0
    %73 = vmatpush1.msra.mxu0 0.0
    %74 = vmatprep.subr.mxu0 0.0
    %75 = vmatpush1.msra.mxu0 0.0
    %76 = vmatprep.subr.mxu0 0.0
    %77 = vmatpush1.msra.mxu0 0.0
    %78 = vmatprep.subr.mxu0 0.0
    %79 = vmatpush1.msra.mxu0 0.0
    %80 = vmatprep.subr.mxu0 0.0
    %81 = vmatpush1.msra.mxu0 0.0
    %82 = vmatprep.subr.mxu0 0.0
    %83 = vmatpush1.msra.mxu0 0.0
    %84 = vmatprep.subr.mxu0 0.0
    %85 = vmatpush1.msra.mxu0 0.0
    %86 = vmatprep.subr.mxu0 0.0
    %87 = vmatpush1.msra.mxu0 0.0
    %88 = vmatprep.subr.mxu0 0.0
    %89 = vmatpush1.msra.mxu0 0.0
    %90 = vmatprep.subr.mxu0 0.0
    %91 = vmatpush1.msra.mxu0 0.0
    %92 = vmatprep.subr.mxu0 0.0
    %93 = vmatpush1.msra.mxu0 0.0
    %94 = vmatprep.subr.mxu0 0.0
    %95 = vmatpush1.msra.mxu0 0.0
    %96 = vmatprep.subr.mxu0 0.0
    %97 = vmatpush1.msra.mxu0 0.0
    %98 = vmatprep.mubr.f32.mxu0 0.0
    %99 = vmatmul.mubr.f32.gmra.mrb[0].mxu0 %v32
    %v100 = vpop.f32.mrb[0].mxu0
    %v101 = vadd.f32 %v29, %v100
    %v102 = vpop.f32.mrb[0].mxu0
    %103 = vdwg.mxu0
    %v104 = vmax.f32 %v101, 0.0
    %v105 = vld [vmem:[%s1] sm:$0xff]
    %v106 = vld [vmem:[%s2 + $0x10] sm:$0xff]
    %v107 = vld [vmem:[%s2 + $0x18] sm:$0xff]
    %v108 = vld [vmem:[%s2 + $0x20] sm:$0xff]
    %v109 = vlaneseq
    %v110 = vshrl.u32 %v109, 7
    %v111 = vsub.s32 0, %v110
    %v112 = vrot.slane %v22, %v111
    %vm113 = vcmask 195584
    %v115 = vsel %vm113, %v105, 0
    %117 = vmatprep.subr.mxu0 0.0
    %118 = vmatpush1.msra.mxu0 %v106
    %119 = vmatprep.subr.mxu0 0.0
    %120 = vmatpush1.msra.mxu0 %v107
    %121 = vmatprep.subr.mxu0 0.0
    %122 = vmatpush1.msra.mxu0 %v108
    %123 = vmatprep.subr.mxu0 0.0
    %124 = vmatpush1.msra.mxu0 0.0
    %125 = vmatprep.subr.mxu0 0.0
    %126 = vmatpush1.msra.mxu0 0.0
    %127 = vmatprep.subr.mxu0 0.0
    %128 = vmatpush1.msra.mxu0 0.0
    %129 = vmatprep.subr.mxu0 0.0
    %130 = vmatpush1.msra.mxu0 0.0
    %131 = vmatprep.subr.mxu0 0.0
    %132 = vmatpush1.msra.mxu0 0.0
    %133 = vmatprep.subr.mxu0 0.0
    %134 = vmatpush1.msra.mxu0 0.0
    %135 = vmatprep.subr.mxu0 0.0
    %136 = vmatpush1.msra.mxu0 0.0
    %137 = vmatprep.subr.mxu0 0.0
    %138 = vmatpush1.msra.mxu0 0.0
    %139 = vmatprep.subr.mxu0 0.0
    %140 = vmatpush1.msra.mxu0 0.0
    %141 = vmatprep.subr.mxu0 0.0
    %142 = vmatpush1.msra.mxu0 0.0
    %143 = vmatprep.subr.mxu0 0.0
    %144 = vmatpush1.msra.mxu0 0.0
    %145 = vmatprep.subr.mxu0 0.0
    %146 = vmatpush1.msra.mxu0 0.0
    %147 = vmatprep.subr.mxu0 0.0
    %148 = vmatpush1.msra.mxu0 0.0
    %149 = vmatprep.subr.mxu0 0.0
    %150 = vmatpush1.msra.mxu0 0.0
    %151 = vmatprep.subr.mxu0 0.0
    %152 = vmatpush1.msra.mxu0 0.0
    %153 = vmatprep.subr.mxu0 0.0
    %154 = vmatpush1.msra.mxu0 0.0
    %155 = vmatprep.subr.mxu0 0.0
    %156 = vmatpush1.msra.mxu0 0.0
    %157 = vmatprep.subr.mxu0 0.0
    %158 = vmatpush1.msra.mxu0 0.0
    %159 = vmatprep.subr.mxu0 0.0
    %160 = vmatpush1.msra.mxu0 0.0
    %161 = vmatprep.subr.mxu0 0.0
    %162 = vmatpush1.msra.mxu0 0.0
    %163 = vmatprep.subr.mxu0 0.0
    %164 = vmatpush1.msra.mxu0 0.0
    %165 = vmatprep.subr.mxu0 0.0
    %166 = vmatpush1.msra.mxu0 0.0
    %167 = vmatprep.subr.mxu0 0.0
    %168 = vmatpush1.msra.mxu0 0.0
    %169 = vmatprep.subr.mxu0 0.0
    %170 = vmatpush1.msra.mxu0 0.0
    %171 = vmatprep.subr.mxu0 0.0
    %172 = vmatpush1.msra.mxu0 0.0
    %173 = vmatprep.subr.mxu0 0.0
    %174 = vmatpush1.msra.mxu0 0.0
    %175 = vmatprep.subr.mxu0 0.0
    %176 = vmatpush1.msra.mxu0 0.0
    %177 = vmatprep.subr.mxu0 0.0
    %178 = vmatpush1.msra.mxu0 0.0
    %179 = vmatprep.subr.mxu0 0.0
    %180 = vmatpush1.msra.mxu0 0.0
    %181 = vmatprep.mubr.f32.mxu0 0.0
    %182 = vmatmul.mubr.f32.gmra.mrb[0].mxu0 %v115
    %v183 = vpop.f32.mrb[0].mxu0
    %v184 = vadd.f32 %v112, %v183
    %v185 = vpop.f32.mrb[0].mxu0
    %186 = vdwg.mxu0
    %v187 = vmax.f32 %v184, 0.0
    %v188 = vld [vmem:[%s3] sm:$0xff]
    %v189 = vld [vmem:[%s3 + $0x8] sm:$0xff]
    %v190 = vld [vmem:[%s3 + $0x10] sm:$0xff]
    %v191 = vld [vmem:[%s3 + $0x18] sm:$0xff]
    %v192 = vld [vmem:[%s3 + $0x20] sm:$0xff]
    %v193 = vld [vmem:[%s3 + $0x28] sm:$0xff]
    %v194 = vld [vmem:[%s3 + $0x30] sm:$0xff]
    %v195 = vld [vmem:[%s3 + $0x38] sm:$0xff]
    %vm196 = vcmask 261120
    %v198 = vsel %vm196, %v187, 0
    %200 = vmatprep.subr.mxu0 0.0
    %201 = vmatpush1.msra.mxu0 %v192
    %202 = vmatprep.subr.mxu0 0.0
    %203 = vmatpush1.msra.mxu0 %v193
    %204 = vmatprep.subr.mxu0 0.0
    %205 = vmatpush1.msra.mxu0 %v194
    %206 = vmatprep.subr.mxu0 0.0
    %207 = vmatpush1.msra.mxu0 %v195
    %208 = vmatprep.subr.mxu0 0.0
    %209 = vmatpush1.msra.mxu0 0.0
    %210 = vmatprep.subr.mxu0 0.0
    %211 = vmatpush1.msra.mxu0 0.0
    %212 = vmatprep.subr.mxu0 0.0
    %213 = vmatpush1.msra.mxu0 0.0
    %214 = vmatprep.subr.mxu0 0.0
    %215 = vmatpush1.msra.mxu0 0.0
    %216 = vmatprep.subr.mxu0 0.0
    %217 = vmatpush1.msra.mxu0 0.0
    %218 = vmatprep.subr.mxu0 0.0
    %219 = vmatpush1.msra.mxu0 0.0
    %220 = vmatprep.subr.mxu0 0.0
    %221 = vmatpush1.msra.mxu0 0.0
    %222 = vmatprep.subr.mxu0 0.0
    %223 = vmatpush1.msra.mxu0 0.0
    %224 = vmatprep.subr.mxu0 0.0
    %225 = vmatpush1.msra.mxu0 0.0
    %226 = vmatprep.subr.mxu0 0.0
    %227 = vmatpush1.msra.mxu0 0.0
    %228 = vmatprep.subr.mxu0 0.0
    %229 = vmatpush1.msra.mxu0 0.0
    %230 = vmatprep.subr.mxu0 0.0
    %231 = vmatpush1.msra.mxu0 0.0
    %232 = vmatprep.subr.mxu0 0.0
    %233 = vmatpush1.msra.mxu0 0.0
    %234 = vmatprep.subr.mxu0 0.0
    %235 = vmatpush1.msra.mxu0 0.0
    %236 = vmatprep.subr.mxu0 0.0
    %237 = vmatpush1.msra.mxu0 0.0
    %238 = vmatprep.subr.mxu0 0.0
    %239 = vmatpush1.msra.mxu0 0.0
    %240 = vmatprep.subr.mxu0 0.0
    %241 = vmatpush1.msra.mxu0 0.0
    %242 = vmatprep.subr.mxu0 0.0
    %243 = vmatpush1.msra.mxu0 0.0
    %244 = vmatprep.subr.mxu0 0.0
    %245 = vmatpush1.msra.mxu0 0.0
    %246 = vmatprep.subr.mxu0 0.0
    %247 = vmatpush1.msra.mxu0 0.0
    %248 = vmatprep.subr.mxu0 0.0
    %249 = vmatpush1.msra.mxu0 0.0
    %250 = vmatprep.subr.mxu0 0.0
    %251 = vmatpush1.msra.mxu0 0.0
    %252 = vmatprep.subr.mxu0 0.0
    %253 = vmatpush1.msra.mxu0 0.0
    %254 = vmatprep.subr.mxu0 0.0
    %255 = vmatpush1.msra.mxu0 0.0
    %256 = vmatprep.subr.mxu0 0.0
    %257 = vmatpush1.msra.mxu0 0.0
    %258 = vmatprep.subr.mxu0 0.0
    %259 = vmatpush1.msra.mxu0 0.0
    %260 = vmatprep.subr.mxu0 0.0
    %261 = vmatpush1.msra.mxu0 0.0
    %262 = vmatprep.subr.mxu0 0.0
    %263 = vmatpush1.msra.mxu0 0.0
    %264 = vmatprep.mubr.f32.mxu0 0.0
    %265 = vmatmul.mubr.f32.gmra.mrb[0].mxu0 %v198
    %v266 = vpop.f32.mrb[0].mxu0
    %v267 = vadd.f32 0.0, %v266
    %v268 = vpop.f32.mrb[0].mxu0
    %269 = vdwg.mxu0
    %v271 = vsel %vm196, %v104, 0
    %273 = vmatprep.subr.mxu0 0.0
    %274 = vmatpush1.msra.mxu0 %v188
    %275 = vmatprep.subr.mxu0 0.0
    %276 = vmatpush1.msra.mxu0 %v189
    %277 = vmatprep.subr.mxu0 0.0
    %278 = vmatpush1.msra.mxu0 %v190
    %279 = vmatprep.subr.mxu0 0.0
    %280 = vmatpush1.msra.mxu0 %v191
    %281 = vmatprep.subr.mxu0 0.0
    %282 = vmatpush1.msra.mxu0 0.0
    %283 = vmatprep.subr.mxu0 0.0
    %284 = vmatpush1.msra.mxu0 0.0
    %285 = vmatprep.subr.mxu0 0.0
    %286 = vmatpush1.msra.mxu0 0.0
    %287 = vmatprep.subr.mxu0 0.0
    %288 = vmatpush1.msra.mxu0 0.0
    %289 = vmatprep.subr.mxu0 0.0
    %290 = vmatpush1.msra.mxu0 0.0
    %291 = vmatprep.subr.mxu0 0.0
    %292 = vmatpush1.msra.mxu0 0.0
    %293 = vmatprep.subr.mxu0 0.0
    %294 = vmatpush1.msra.mxu0 0.0
    %295 = vmatprep.subr.mxu0 0.0
    %296 = vmatpush1.msra.mxu0 0.0
    %297 = vmatprep.subr.mxu0 0.0
    %298 = vmatpush1.msra.mxu0 0.0
    %299 = vmatprep.subr.mxu0 0.0
    %300 = vmatpush1.msra.mxu0 0.0
    %301 = vmatprep.subr.mxu0 0.0
    %302 = vmatpush1.msra.mxu0 0.0
    %303 = vmatprep.subr.mxu0 0.0
    %304 = vmatpush1.msra.mxu0 0.0
    %305 = vmatprep.subr.mxu0 0.0
    %306 = vmatpush1.msra.mxu0 0.0
    %307 = vmatprep.subr.mxu0 0.0
    %308 = vmatpush1.msra.mxu0 0.0
    %309 = vmatprep.subr.mxu0 0.0
    %310 = vmatpush1.msra.mxu0 0.0
    %311 = vmatprep.subr.mxu0 0.0
    %312 = vmatpush1.msra.mxu0 0.0
    %313 = vmatprep.subr.mxu0 0.0
    %314 = vmatpush1.msra.mxu0 0.0
    %315 = vmatprep.subr.mxu0 0.0
    %316 = vmatpush1.msra.mxu0 0.0
    %317 = vmatprep.subr.mxu0 0.0
    %318 = vmatpush1.msra.mxu0 0.0
    %319 = vmatprep.subr.mxu0 0.0
    %320 = vmatpush1.msra.mxu0 0.0
    %321 = vmatprep.subr.mxu0 0.0
    %322 = vmatpush1.msra.mxu0 0.0
    %323 = vmatprep.subr.mxu0 0.0
    %324 = vmatpush1.msra.mxu0 0.0
    %325 = vmatprep.subr.mxu0 0.0
    %326 = vmatpush1.msra.mxu0 0.0
    %327 = vmatprep.subr.mxu0 0.0
    %328 = vmatpush1.msra.mxu0 0.0
    %329 = vmatprep.subr.mxu0 0.0
    %330 = vmatpush1.msra.mxu0 0.0
    %331 = vmatprep.subr.mxu0 0.0
    %332 = vmatpush1.msra.mxu0 0.0
    %333 = vmatprep.subr.mxu0 0.0
    %334 = vmatpush1.msra.mxu0 0.0
    %335 = vmatprep.subr.mxu0 0.0
    %336 = vmatpush1.msra.mxu0 0.0
    %337 = vmatprep.mubr.f32.mxu0 0.0
    %338 = vmatmul.mubr.f32.gmra.mrb[0].mxu0 %v271
    %v339 = vpop.f32.mrb[0].mxu0
    %v340 = vadd.f32 %v267, %v339
    %v341 = vpop.f32.mrb[0].mxu0
    %342 = vdwg.mxu0
    %v343 = vld [vmem:[%s3 + $0x40] sm:$0x1]
    %v344 = vlaneseq
    %v345 = vshrl.u32 %v344, 7
    %v346 = vsub.s32 0, %v345
    %v347 = vrot.slane %v343, %v346
    %v348 = vadd.f32 %v340, %v347
    %350 = vrot.lane.b32.xlu0 %v348, 96
    %v351 = vpop.permute.xlu0 %350
    %vm352 = vcmask 64512
    %v353 = vsel %vm352, %v348, 0
    %v355 = vsel %vm352, %v351, 0
    %357 = vmatprep.subr.mxu0 0.0
    %358 = vmatpush1.xpose.msra.mxu0 %v355
    %359 = vmatprep.subr.mxu0 0.0
    %360 = vmatpush1.xpose.msra.mxu0 0.0
    %361 = vmatprep.subr.mxu0 0.0
    %362 = vmatpush1.xpose.msra.mxu0 0.0
    %363 = vmatprep.subr.mxu0 0.0
    %364 = vmatpush1.xpose.msra.mxu0 0.0
    %365 = vmatprep.subr.mxu0 0.0
    %366 = vmatpush1.xpose.msra.mxu0 0.0
    %367 = vmatprep.subr.mxu0 0.0
    %368 = vmatpush1.xpose.msra.mxu0 0.0
    %369 = vmatprep.subr.mxu0 0.0
    %370 = vmatpush1.xpose.msra.mxu0 0.0
    %371 = vmatprep.subr.mxu0 0.0
    %372 = vmatpush1.xpose.msra.mxu0 0.0
    %373 = vmatprep.subr.mxu0 0.0
    %374 = vmatpush1.xpose.msra.mxu0 0.0
    %375 = vmatprep.subr.mxu0 0.0
    %376 = vmatpush1.xpose.msra.mxu0 0.0
    %377 = vmatprep.subr.mxu0 0.0
    %378 = vmatpush1.xpose.msra.mxu0 0.0
    %379 = vmatprep.subr.mxu0 0.0
    %380 = vmatpush1.xpose.msra.mxu0 0.0
    %381 = vmatprep.subr.mxu0 0.0
    %382 = vmatpush1.xpose.msra.mxu0 0.0
    %383 = vmatprep.subr.mxu0 0.0
    %384 = vmatpush1.xpose.msra.mxu0 0.0
    %385 = vmatprep.subr.mxu0 0.0
    %386 = vmatpush1.xpose.msra.mxu0 0.0
    %387 = vmatprep.subr.mxu0 0.0
    %388 = vmatpush1.xpose.msra.mxu0 0.0
    %389 = vmatprep.subr.mxu0 0.0
    %390 = vmatpush1.xpose.msra.mxu0 0.0
    %391 = vmatprep.subr.mxu0 0.0
    %392 = vmatpush1.xpose.msra.mxu0 0.0
    %393 = vmatprep.subr.mxu0 0.0
    %394 = vmatpush1.xpose.msra.mxu0 0.0
    %395 = vmatprep.subr.mxu0 0.0
    %396 = vmatpush1.xpose.msra.mxu0 0.0
    %397 = vmatprep.subr.mxu0 0.0
    %398 = vmatpush1.xpose.msra.mxu0 0.0
    %399 = vmatprep.subr.mxu0 0.0
    %400 = vmatpush1.xpose.msra.mxu0 0.0
    %401 = vmatprep.subr.mxu0 0.0
    %402 = vmatpush1.xpose.msra.mxu0 0.0
    %403 = vmatprep.subr.mxu0 0.0
    %404 = vmatpush1.xpose.msra.mxu0 0.0
    %405 = vmatprep.subr.mxu0 0.0
    %406 = vmatpush1.xpose.msra.mxu0 0.0
    %407 = vmatprep.subr.mxu0 0.0
    %408 = vmatpush1.xpose.msra.mxu0 0.0
    %409 = vmatprep.subr.mxu0 0.0
    %410 = vmatpush1.xpose.msra.mxu0 0.0
    %411 = vmatprep.subr.mxu0 0.0
    %412 = vmatpush1.xpose.msra.mxu0 0.0
    %413 = vmatprep.subr.mxu0 0.0
    %414 = vmatpush1.xpose.msra.mxu0 0.0
    %415 = vmatprep.subr.mxu0 0.0
    %416 = vmatpush1.xpose.msra.mxu0 0.0
    %417 = vmatprep.subr.mxu0 0.0
    %418 = vmatpush1.xpose.msra.mxu0 0.0
    %419 = vmatprep.subr.mxu0 0.0
    %420 = vmatpush1.xpose.msra.mxu0 0.0
    %421 = vmatprep.mubr.f32.mxu0 0.0
    %422 = vmatmul.mubr.f32.gmra.mrb[0].mxu0 %v353
    %v423 = vpop.f32.mrb[0].mxu0
    %v424 = vadd.f32 0.0, %v423
    %v425 = vpop.f32.mrb[0].mxu0
    %426 = vdwg.mxu0
    %v427 = vsel %vm352, %v424, -inf
    %428 = vmax.xlane.f32.xlu0 %v427
    %v429 = vpop.xlane.xlu0 %428
    %v430 = vsub.f32 %v424, %v429
    %v431 = vmul.f32 %v430, 1.442695
    %v432 = vpow.pop %v431
    %v433 = vsel %vm352, %v432, 0.0
    %434 = vadd.xlane.f32.xlu0 %v433
    %v435 = vpop.xlane.xlu0 %434
    %v436 = vrcp.pop %v435
    %v437 = vmul.f32 %v432, %v436
    %438 = vrot.lane.b32.xlu0 %v348, 64
    %v439 = vpop.permute.xlu0 %438
    %v442 = vsel %vm352, %v437, 0
    %444 = vmatprep.subr.mxu0 0.0
    %445 = vmatpush1.msra.mxu0 %v439
    %446 = vmatprep.subr.mxu0 0.0
    %447 = vmatpush1.msra.mxu0 0.0
    %448 = vmatprep.subr.mxu0 0.0
    %449 = vmatpush1.msra.mxu0 0.0
    %450 = vmatprep.subr.mxu0 0.0
    %451 = vmatpush1.msra.mxu0 0.0
    %452 = vmatprep.subr.mxu0 0.0
    %453 = vmatpush1.msra.mxu0 0.0
    %454 = vmatprep.subr.mxu0 0.0
    %455 = vmatpush1.msra.mxu0 0.0
    %456 = vmatprep.subr.mxu0 0.0
    %457 = vmatpush1.msra.mxu0 0.0
    %458 = vmatprep.subr.mxu0 0.0
    %459 = vmatpush1.msra.mxu0 0.0
    %460 = vmatprep.subr.mxu0 0.0
    %461 = vmatpush1.msra.mxu0 0.0
    %462 = vmatprep.subr.mxu0 0.0
    %463 = vmatpush1.msra.mxu0 0.0
    %464 = vmatprep.subr.mxu0 0.0
    %465 = vmatpush1.msra.mxu0 0.0
    %466 = vmatprep.subr.mxu0 0.0
    %467 = vmatpush1.msra.mxu0 0.0
    %468 = vmatprep.subr.mxu0 0.0
    %469 = vmatpush1.msra.mxu0 0.0
    %470 = vmatprep.subr.mxu0 0.0
    %471 = vmatpush1.msra.mxu0 0.0
    %472 = vmatprep.subr.mxu0 0.0
    %473 = vmatpush1.msra.mxu0 0.0
    %474 = vmatprep.subr.mxu0 0.0
    %475 = vmatpush1.msra.mxu0 0.0
    %476 = vmatprep.subr.mxu0 0.0
    %477 = vmatpush1.msra.mxu0 0.0
    %478 = vmatprep.subr.mxu0 0.0
    %479 = vmatpush1.msra.mxu0 0.0
    %480 = vmatprep.subr.mxu0 0.0
    %481 = vmatpush1.msra.mxu0 0.0
    %482 = vmatprep.subr.mxu0 0.0
    %483 = vmatpush1.msra.mxu0 0.0
    %484 = vmatprep.subr.mxu0 0.0
    %485 = vmatpush1.msra.mxu0 0.0
    %486 = vmatprep.subr.mxu0 0.0
    %487 = vmatpush1.msra.mxu0 0.0
    %488 = vmatprep.subr.mxu0 0.0
    %489 = vmatpush1.msra.mxu0 0.0
    %490 = vmatprep.subr.mxu0 0.0
    %491 = vmatpush1.msra.mxu0 0.0
    %492 = vmatprep.subr.mxu0 0.0
    %493 = vmatpush1.msra.mxu0 0.0
    %494 = vmatprep.subr.mxu0 0.0
    %495 = vmatpush1.msra.mxu0 0.0
    %496 = vmatprep.subr.mxu0 0.0
    %497 = vmatpush1.msra.mxu0 0.0
    %498 = vmatprep.subr.mxu0 0.0
    %499 = vmatpush1.msra.mxu0 0.0
    %500 = vmatprep.subr.mxu0 0.0
    %501 = vmatpush1.msra.mxu0 0.0
    %502 = vmatprep.subr.mxu0 0.0
    %503 = vmatpush1.msra.mxu0 0.0
    %504 = vmatprep.subr.mxu0 0.0
    %505 = vmatpush1.msra.mxu0 0.0
    %506 = vmatprep.subr.mxu0 0.0
    %507 = vmatpush1.msra.mxu0 0.0
    %508 = vmatprep.mubr.f32.mxu0 0.0
    %509 = vmatmul.mubr.f32.gmra.mrb[0].mxu0 %v442
    %v510 = vpop.f32.mrb[0].mxu0
    %v511 = vadd.f32 0.0, %v510
    %v512 = vpop.f32.mrb[0].mxu0
    %513 = vdwg.mxu0
    %514 = vst.msk [vmem:[#allocation2] sm:$0xff] %vm352, %v511
    %515 = vrot.lane.b32.xlu0 %v348, 120
    %v516 = vpop.permute.xlu0 %515
    %517 = vrot.lane.b32.xlu0 %v348, 88
    %v518 = vpop.permute.xlu0 %517
    %v519 = vsel %vm352, %v516, 0
    %v521 = vsel %vm352, %v518, 0
    %523 = vmatprep.subr.mxu0 0.0
    %524 = vmatpush1.xpose.msra.mxu0 %v521
    %525 = vmatprep.subr.mxu0 0.0
    %526 = vmatpush1.xpose.msra.mxu0 0.0
    %527 = vmatprep.subr.mxu0 0.0
    %528 = vmatpush1.xpose.msra.mxu0 0.0
    %529 = vmatprep.subr.mxu0 0.0
    %530 = vmatpush1.xpose.msra.mxu0 0.0
    %531 = vmatprep.subr.mxu0 0.0
    %532 = vmatpush1.xpose.msra.mxu0 0.0
    %533 = vmatprep.subr.mxu0 0.0
    %534 = vmatpush1.xpose.msra.mxu0 0.0
    %535 = vmatprep.subr.mxu0 0.0
    %536 = vmatpush1.xpose.msra.mxu0 0.0
    %537 = vmatprep.subr.mxu0 0.0
    %538 = vmatpush1.xpose.msra.mxu0 0.0
    %539 = vmatprep.subr.mxu0 0.0
    %540 = vmatpush1.xpose.msra.mxu0 0.0
    %541 = vmatprep.subr.mxu0 0.0
    %542 = vmatpush1.xpose.msra.mxu0 0.0
    %543 = vmatprep.subr.mxu0 0.0
    %544 = vmatpush1.xpose.msra.mxu0 0.0
    %545 = vmatprep.subr.mxu0 0.0
    %546 = vmatpush1.xpose.msra.mxu0 0.0
    %547 = vmatprep.subr.mxu0 0.0
    %548 = vmatpush1.xpose.msra.mxu0 0.0
    %549 = vmatprep.subr.mxu0 0.0
    %550 = vmatpush1.xpose.msra.mxu0 0.0
    %551 = vmatprep.subr.mxu0 0.0
    %552 = vmatpush1.xpose.msra.mxu0 0.0
    %553 = vmatprep.subr.mxu0 0.0
    %554 = vmatpush1.xpose.msra.mxu0 0.0
    %555 = vmatprep.subr.mxu0 0.0
    %556 = vmatpush1.xpose.msra.mxu0 0.0
    %557 = vmatprep.subr.mxu0 0.0
    %558 = vmatpush1.xpose.msra.mxu0 0.0
    %559 = vmatprep.subr.mxu0 0.0
    %560 = vmatpush1.xpose.msra.mxu0 0.0
    %561 = vmatprep.subr.mxu0 0.0
    %562 = vmatpush1.xpose.msra.mxu0 0.0
    %563 = vmatprep.subr.mxu0 0.0
    %564 = vmatpush1.xpose.msra.mxu0 0.0
    %565 = vmatprep.subr.mxu0 0.0
    %566 = vmatpush1.xpose.msra.mxu0 0.0
    %567 = vmatprep.subr.mxu0 0.0
    %568 = vmatpush1.xpose.msra.mxu0 0.0
    %569 = vmatprep.subr.mxu0 0.0
    %570 = vmatpush1.xpose.msra.mxu0 0.0
    %571 = vmatprep.subr.mxu0 0.0
    %572 = vmatpush1.xpose.msra.mxu0 0.0
    %573 = vmatprep.subr.mxu0 0.0
    %574 = vmatpush1.xpose.msra.mxu0 0.0
    %575 = vmatprep.subr.mxu0 0.0
    %576 = vmatpush1.xpose.msra.mxu0 0.0
    %577 = vmatprep.subr.mxu0 0.0
    %578 = vmatpush1.xpose.msra.mxu0 0.0
    %579 = vmatprep.subr.mxu0 0.0
    %580 = vmatpush1.xpose.msra.mxu0 0.0
    %581 = vmatprep.subr.mxu0 0.0
    %582 = vmatpush1.xpose.msra.mxu0 0.0
    %583 = vmatprep.subr.mxu0 0.0
    %584 = vmatpush1.xpose.msra.mxu0 0.0
    %585 = vmatprep.subr.mxu0 0.0
    %586 = vmatpush1.xpose.msra.mxu0 0.0
    %587 = vmatprep.mubr.f32.mxu0 0.0
    %588 = vmatmul.mubr.f32.gmra.mrb[0].mxu0 %v519
    %v589 = vpop.f32.mrb[0].mxu0
    %v590 = vadd.f32 0.0, %v589
    %v591 = vpop.f32.mrb[0].mxu0
    %592 = vdwg.mxu0
    %v593 = vsel %vm352, %v590, -inf
    %594 = vmax.xlane.f32.xlu0 %v593
    %v595 = vpop.xlane.xlu0 %594
    %v596 = vsub.f32 %v590, %v595
    %v597 = vmul.f32 %v596, 1.442695
    %v598 = vpow.pop %v597
    %v599 = vsel %vm352, %v598, 0.0
    %600 = vadd.xlane.f32.xlu0 %v599
    %v601 = vpop.xlane.xlu0 %600
    %v602 = vrcp.pop %v601
    %v603 = vmul.f32 %v598, %v602
    %604 = vrot.lane.b32.xlu0 %v348, 56
    %v605 = vpop.permute.xlu0 %604
    %v608 = vsel %vm352, %v603, 0
    %610 = vmatprep.subr.mxu0 0.0
    %611 = vmatpush1.msra.mxu0 %v605
    %612 = vmatprep.subr.mxu0 0.0
    %613 = vmatpush1.msra.mxu0 0.0
    %614 = vmatprep.subr.mxu0 0.0
    %615 = vmatpush1.msra.mxu0 0.0
    %616 = vmatprep.subr.mxu0 0.0
    %617 = vmatpush1.msra.mxu0 0.0
    %618 = vmatprep.subr.mxu0 0.0
    %619 = vmatpush1.msra.mxu0 0.0
    %620 = vmatprep.subr.mxu0 0.0
    %621 = vmatpush1.msra.mxu0 0.0
    %622 = vmatprep.subr.mxu0 0.0
    %623 = vmatpush1.msra.mxu0 0.0
    %624 = vmatprep.subr.mxu0 0.0
    %625 = vmatpush1.msra.mxu0 0.0
    %626 = vmatprep.subr.mxu0 0.0
    %627 = vmatpush1.msra.mxu0 0.0
    %628 = vmatprep.subr.mxu0 0.0
    %629 = vmatpush1.msra.mxu0 0.0
    %630 = vmatprep.subr.mxu0 0.0
    %631 = vmatpush1.msra.mxu0 0.0
    %632 = vmatprep.subr.mxu0 0.0
    %633 = vmatpush1.msra.mxu0 0.0
    %634 = vmatprep.subr.mxu0 0.0
    %635 = vmatpush1.msra.mxu0 0.0
    %636 = vmatprep.subr.mxu0 0.0
    %637 = vmatpush1.msra.mxu0 0.0
    %638 = vmatprep.subr.mxu0 0.0
    %639 = vmatpush1.msra.mxu0 0.0
    %640 = vmatprep.subr.mxu0 0.0
    %641 = vmatpush1.msra.mxu0 0.0
    %642 = vmatprep.subr.mxu0 0.0
    %643 = vmatpush1.msra.mxu0 0.0
    %644 = vmatprep.subr.mxu0 0.0
    %645 = vmatpush1.msra.mxu0 0.0
    %646 = vmatprep.subr.mxu0 0.0
    %647 = vmatpush1.msra.mxu0 0.0
    %648 = vmatprep.subr.mxu0 0.0
    %649 = vmatpush1.msra.mxu0 0.0
    %650 = vmatprep.subr.mxu0 0.0
    %651 = vmatpush1.msra.mxu0 0.0
    %652 = vmatprep.subr.mxu0 0.0
    %653 = vmatpush1.msra.mxu0 0.0
    %654 = vmatprep.subr.mxu0 0.0
    %655 = vmatpush1.msra.mxu0 0.0
    %656 = vmatprep.subr.mxu0 0.0
    %657 = vmatpush1.msra.mxu0 0.0
    %658 = vmatprep.subr.mxu0 0.0
    %659 = vmatpush1.msra.mxu0 0.0
    %660 = vmatprep.subr.mxu0 0.0
    %661 = vmatpush1.msra.mxu0 0.0
    %662 = vmatprep.subr.mxu0 0.0
    %663 = vmatpush1.msra.mxu0 0.0
    %664 = vmatprep.subr.mxu0 0.0
    %665 = vmatpush1.msra.mxu0 0.0
    %666 = vmatprep.subr.mxu0 0.0
    %667 = vmatpush1.msra.mxu0 0.0
    %668 = vmatprep.subr.mxu0 0.0
    %669 = vmatpush1.msra.mxu0 0.0
    %670 = vmatprep.subr.mxu0 0.0
    %671 = vmatpush1.msra.mxu0 0.0
    %672 = vmatprep.subr.mxu0 0.0
    %673 = vmatpush1.msra.mxu0 0.0
    %674 = vmatprep.mubr.f32.mxu0 0.0
    %675 = vmatmul.mubr.f32.gmra.mrb[0].mxu0 %v608
    %v676 = vpop.f32.mrb[0].mxu0
    %v677 = vadd.f32 0.0, %v676
    %v678 = vpop.f32.mrb[0].mxu0
    %679 = vdwg.mxu0
    %681 = vrot.lane.b32.xlu0 %v677, 8
    %v682 = vpop.permute.xlu0 %681
    %vm684 = vcmask 130112
    %685 = vst.msk [vmem:[#allocation2] sm:$0xff] %vm684, %v682
    %686 = vrot.lane.b32.xlu0 %v348, 112
    %v687 = vpop.permute.xlu0 %686
    %688 = vrot.lane.b32.xlu0 %v348, 80
    %v689 = vpop.permute.xlu0 %688
    %v690 = vsel %vm352, %v687, 0
    %v692 = vsel %vm352, %v689, 0
    %694 = vmatprep.subr.mxu0 0.0
    %695 = vmatpush1.xpose.msra.mxu0 %v692
    %696 = vmatprep.subr.mxu0 0.0
    %697 = vmatpush1.xpose.msra.mxu0 0.0
    %698 = vmatprep.subr.mxu0 0.0
    %699 = vmatpush1.xpose.msra.mxu0 0.0
    %700 = vmatprep.subr.mxu0 0.0
    %701 = vmatpush1.xpose.msra.mxu0 0.0
    %702 = vmatprep.subr.mxu0 0.0
    %703 = vmatpush1.xpose.msra.mxu0 0.0
    %704 = vmatprep.subr.mxu0 0.0
    %705 = vmatpush1.xpose.msra.mxu0 0.0
    %706 = vmatprep.subr.mxu0 0.0
    %707 = vmatpush1.xpose.msra.mxu0 0.0
    %708 = vmatprep.subr.mxu0 0.0
    %709 = vmatpush1.xpose.msra.mxu0 0.0
    %710 = vmatprep.subr.mxu0 0.0
    %711 = vmatpush1.xpose.msra.mxu0 0.0
    %712 = vmatprep.subr.mxu0 0.0
    %713 = vmatpush1.xpose.msra.mxu0 0.0
    %714 = vmatprep.subr.mxu0 0.0
    %715 = vmatpush1.xpose.msra.mxu0 0.0
    %716 = vmatprep.subr.mxu0 0.0
    %717 = vmatpush1.xpose.msra.mxu0 0.0
    %718 = vmatprep.subr.mxu0 0.0
    %719 = vmatpush1.xpose.msra.mxu0 0.0
    %720 = vmatprep.subr.mxu0 0.0
    %721 = vmatpush1.xpose.msra.mxu0 0.0
    %722 = vmatprep.subr.mxu0 0.0
    %723 = vmatpush1.xpose.msra.mxu0 0.0
    %724 = vmatprep.subr.mxu0 0.0
    %725 = vmatpush1.xpose.msra.mxu0 0.0
    %726 = vmatprep.subr.mxu0 0.0
    %727 = vmatpush1.xpose.msra.mxu0 0.0
    %728 = vmatprep.subr.mxu0 0.0
    %729 = vmatpush1.xpose.msra.mxu0 0.0
    %730 = vmatprep.subr.mxu0 0.0
    %731 = vmatpush1.xpose.msra.mxu0 0.0
    %732 = vmatprep.subr.mxu0 0.0
    %733 = vmatpush1.xpose.msra.mxu0 0.0
    %734 = vmatprep.subr.mxu0 0.0
    %735 = vmatpush1.xpose.msra.mxu0 0.0
    %736 = vmatprep.subr.mxu0 0.0
    %737 = vmatpush1.xpose.msra.mxu0 0.0
    %738 = vmatprep.subr.mxu0 0.0
    %739 = vmatpush1.xpose.msra.mxu0 0.0
    %740 = vmatprep.subr.mxu0 0.0
    %741 = vmatpush1.xpose.msra.mxu0 0.0
    %742 = vmatprep.subr.mxu0 0.0
    %743 = vmatpush1.xpose.msra.mxu0 0.0
    %744 = vmatprep.subr.mxu0 0.0
    %745 = vmatpush1.xpose.msra.mxu0 0.0
    %746 = vmatprep.subr.mxu0 0.0
    %747 = vmatpush1.xpose.msra.mxu0 0.0
    %748 = vmatprep.subr.mxu0 0.0
    %749 = vmatpush1.xpose.msra.mxu0 0.0
    %750 = vmatprep.subr.mxu0 0.0
    %751 = vmatpush1.xpose.msra.mxu0 0.0
    %752 = vmatprep.subr.mxu0 0.0
    %753 = vmatpush1.xpose.msra.mxu0 0.0
    %754 = vmatprep.subr.mxu0 0.0
    %755 = vmatpush1.xpose.msra.mxu0 0.0
    %756 = vmatprep.subr.mxu0 0.0
    %757 = vmatpush1.xpose.msra.mxu0 0.0
    %758 = vmatprep.mubr.f32.mxu0 0.0
    %759 = vmatmul.mubr.f32.gmra.mrb[0].mxu0 %v690
    %v760 = vpop.f32.mrb[0].mxu0
    %v761 = vadd.f32 0.0, %v760
    %v762 = vpop.f32.mrb[0].mxu0
    %763 = vdwg.mxu0
    %v764 = vsel %vm352, %v761, -inf
    %765 = vmax.xlane.f32.xlu0 %v764
    %v766 = vpop.xlane.xlu0 %765
    %v767 = vsub.f32 %v761, %v766
    %v768 = vmul.f32 %v767, 1.442695
    %v769 = vpow.pop %v768
    %v770 = vsel %vm352, %v769, 0.0
    %771 = vadd.xlane.f32.xlu0 %v770
    %v772 = vpop.xlane.xlu0 %771
    %v773 = vrcp.pop %v772
    %v774 = vmul.f32 %v769, %v773
    %775 = vrot.lane.b32.xlu0 %v348, 48
    %v776 = vpop.permute.xlu0 %775
    %v779 = vsel %vm352, %v774, 0
    %781 = vmatprep.subr.mxu0 0.0
    %782 = vmatpush1.msra.mxu0 %v776
    %783 = vmatprep.subr.mxu0 0.0
    %784 = vmatpush1.msra.mxu0 0.0
    %785 = vmatprep.subr.mxu0 0.0
    %786 = vmatpush1.msra.mxu0 0.0
    %787 = vmatprep.subr.mxu0 0.0
    %788 = vmatpush1.msra.mxu0 0.0
    %789 = vmatprep.subr.mxu0 0.0
    %790 = vmatpush1.msra.mxu0 0.0
    %791 = vmatprep.subr.mxu0 0.0
    %792 = vmatpush1.msra.mxu0 0.0
    %793 = vmatprep.subr.mxu0 0.0
    %794 = vmatpush1.msra.mxu0 0.0
    %795 = vmatprep.subr.mxu0 0.0
    %796 = vmatpush1.msra.mxu0 0.0
    %797 = vmatprep.subr.mxu0 0.0
    %798 = vmatpush1.msra.mxu0 0.0
    %799 = vmatprep.subr.mxu0 0.0
    %800 = vmatpush1.msra.mxu0 0.0
    %801 = vmatprep.subr.mxu0 0.0
    %802 = vmatpush1.msra.mxu0 0.0
    %803 = vmatprep.subr.mxu0 0.0
    %804 = vmatpush1.msra.mxu0 0.0
    %805 = vmatprep.subr.mxu0 0.0
    %806 = vmatpush1.msra.mxu0 0.0
    %807 = vmatprep.subr.mxu0 0.0
    %808 = vmatpush1.msra.mxu0 0.0
    %809 = vmatprep.subr.mxu0 0.0
    %810 = vmatpush1.msra.mxu0 0.0
    %811 = vmatprep.subr.mxu0 0.0
    %812 = vmatpush1.msra.mxu0 0.0
    %813 = vmatprep.subr.mxu0 0.0
    %814 = vmatpush1.msra.mxu0 0.0
    %815 = vmatprep.subr.mxu0 0.0
    %816 = vmatpush1.msra.mxu0 0.0
    %817 = vmatprep.subr.mxu0 0.0
    %818 = vmatpush1.msra.mxu0 0.0
    %819 = vmatprep.subr.mxu0 0.0
    %820 = vmatpush1.msra.mxu0 0.0
    %821 = vmatprep.subr.mxu0 0.0
    %822 = vmatpush1.msra.mxu0 0.0
    %823 = vmatprep.subr.mxu0 0.0
    %824 = vmatpush1.msra.mxu0 0.0
    %825 = vmatprep.subr.mxu0 0.0
    %826 = vmatpush1.msra.mxu0 0.0
    %827 = vmatprep.subr.mxu0 0.0
    %828 = vmatpush1.msra.mxu0 0.0
    %829 = vmatprep.subr.mxu0 0.0
    %830 = vmatpush1.msra.mxu0 0.0
    %831 = vmatprep.subr.mxu0 0.0
    %832 = vmatpush1.msra.mxu0 0.0
    %833 = vmatprep.subr.mxu0 0.0
    %834 = vmatpush1.msra.mxu0 0.0
    %835 = vmatprep.subr.mxu0 0.0
    %836 = vmatpush1.msra.mxu0 0.0
    %837 = vmatprep.subr.mxu0 0.0
    %838 = vmatpush1.msra.mxu0 0.0
    %839 = vmatprep.subr.mxu0 0.0
    %840 = vmatpush1.msra.mxu0 0.0
    %841 = vmatprep.subr.mxu0 0.0
    %842 = vmatpush1.msra.mxu0 0.0
    %843 = vmatprep.subr.mxu0 0.0
    %844 = vmatpush1.msra.mxu0 0.0
    %845 = vmatprep.mubr.f32.mxu0 0.0
    %846 = vmatmul.mubr.f32.gmra.mrb[0].mxu0 %v779
    %v847 = vpop.f32.mrb[0].mxu0
    %v848 = vadd.f32 0.0, %v847
    %v849 = vpop.f32.mrb[0].mxu0
    %850 = vdwg.mxu0
    %852 = vrot.lane.b32.xlu0 %v848, 16
    %v853 = vpop.permute.xlu0 %852
    %vm855 = vcmask 195712
    %856 = vst.msk [vmem:[#allocation2] sm:$0xff] %vm855, %v853
    %857 = vrot.lane.b32.xlu0 %v348, 104
    %v858 = vpop.permute.xlu0 %857
    %859 = vrot.lane.b32.xlu0 %v348, 72
    %v860 = vpop.permute.xlu0 %859
    %v861 = vsel %vm352, %v858, 0
    %v863 = vsel %vm352, %v860, 0
    %865 = vmatprep.subr.mxu0 0.0
    %866 = vmatpush1.xpose.msra.mxu0 %v863
    %867 = vmatprep.subr.mxu0 0.0
    %868 = vmatpush1.xpose.msra.mxu0 0.0
    %869 = vmatprep.subr.mxu0 0.0
    %870 = vmatpush1.xpose.msra.mxu0 0.0
    %871 = vmatprep.subr.mxu0 0.0
    %872 = vmatpush1.xpose.msra.mxu0 0.0
    %873 = vmatprep.subr.mxu0 0.0
    %874 = vmatpush1.xpose.msra.mxu0 0.0
    %875 = vmatprep.subr.mxu0 0.0
    %876 = vmatpush1.xpose.msra.mxu0 0.0
    %877 = vmatprep.subr.mxu0 0.0
    %878 = vmatpush1.xpose.msra.mxu0 0.0
    %879 = vmatprep.subr.mxu0 0.0
    %880 = vmatpush1.xpose.msra.mxu0 0.0
    %881 = vmatprep.subr.mxu0 0.0
    %882 = vmatpush1.xpose.msra.mxu0 0.0
    %883 = vmatprep.subr.mxu0 0.0
    %884 = vmatpush1.xpose.msra.mxu0 0.0
    %885 = vmatprep.subr.mxu0 0.0
    %886 = vmatpush1.xpose.msra.mxu0 0.0
    %887 = vmatprep.subr.mxu0 0.0
    %888 = vmatpush1.xpose.msra.mxu0 0.0
    %889 = vmatprep.subr.mxu0 0.0
    %890 = vmatpush1.xpose.msra.mxu0 0.0
    %891 = vmatprep.subr.mxu0 0.0
    %892 = vmatpush1.xpose.msra.mxu0 0.0
    %893 = vmatprep.subr.mxu0 0.0
    %894 = vmatpush1.xpose.msra.mxu0 0.0
    %895 = vmatprep.subr.mxu0 0.0
    %896 = vmatpush1.xpose.msra.mxu0 0.0
    %897 = vmatprep.subr.mxu0 0.0
    %898 = vmatpush1.xpose.msra.mxu0 0.0
    %899 = vmatprep.subr.mxu0 0.0
    %900 = vmatpush1.xpose.msra.mxu0 0.0
    %901 = vmatprep.subr.mxu0 0.0
    %902 = vmatpush1.xpose.msra.mxu0 0.0
    %903 = vmatprep.subr.mxu0 0.0
    %904 = vmatpush1.xpose.msra.mxu0 0.0
    %905 = vmatprep.subr.mxu0 0.0
    %906 = vmatpush1.xpose.msra.mxu0 0.0
    %907 = vmatprep.subr.mxu0 0.0
    %908 = vmatpush1.xpose.msra.mxu0 0.0
    %909 = vmatprep.subr.mxu0 0.0
    %910 = vmatpush1.xpose.msra.mxu0 0.0
    %911 = vmatprep.subr.mxu0 0.0
    %912 = vmatpush1.xpose.msra.mxu0 0.0
    %913 = vmatprep.subr.mxu0 0.0
    %914 = vmatpush1.xpose.msra.mxu0 0.0
    %915 = vmatprep.subr.mxu0 0.0
    %916 = vmatpush1.xpose.msra.mxu0 0.0
    %917 = vmatprep.subr.mxu0 0.0
    %918 = vmatpush1.xpose.msra.mxu0 0.0
    %919 = vmatprep.subr.mxu0 0.0
    %920 = vmatpush1.xpose.msra.mxu0 0.0
    %921 = vmatprep.subr.mxu0 0.0
    %922 = vmatpush1.xpose.msra.mxu0 0.0
    %923 = vmatprep.subr.mxu0 0.0
    %924 = vmatpush1.xpose.msra.mxu0 0.0
    %925 = vmatprep.subr.mxu0 0.0
    %926 = vmatpush1.xpose.msra.mxu0 0.0
    %927 = vmatprep.subr.mxu0 0.0
    %928 = vmatpush1.xpose.msra.mxu0 0.0
    %929 = vmatprep.mubr.f32.mxu0 0.0
    %930 = vmatmul.mubr.f32.gmra.mrb[0].mxu0 %v861
    %v931 = vpop.f32.mrb[0].mxu0
    %v932 = vadd.f32 0.0, %v931
    %v933 = vpop.f32.mrb[0].mxu0
    %934 = vdwg.mxu0
    %v935 = vsel %vm352, %v932, -inf
    %936 = vmax.xlane.f32.xlu0 %v935
    %v937 = vpop.xlane.xlu0 %936
    %v938 = vsub.f32 %v932, %v937
    %v939 = vmul.f32 %v938, 1.442695
    %v940 = vpow.pop %v939
    %v941 = vsel %vm352, %v940, 0.0
    %942 = vadd.xlane.f32.xlu0 %v941
    %v943 = vpop.xlane.xlu0 %942
    %v944 = vrcp.pop %v943
    %v945 = vmul.f32 %v940, %v944
    %946 = vrot.lane.b32.xlu0 %v348, 40
    %v947 = vpop.permute.xlu0 %946
    %v950 = vsel %vm352, %v945, 0
    %952 = vmatprep.subr.mxu0 0.0
    %953 = vmatpush1.msra.mxu0 %v947
    %954 = vmatprep.subr.mxu0 0.0
    %955 = vmatpush1.msra.mxu0 0.0
    %956 = vmatprep.subr.mxu0 0.0
    %957 = vmatpush1.msra.mxu0 0.0
    %958 = vmatprep.subr.mxu0 0.0
    %959 = vmatpush1.msra.mxu0 0.0
    %960 = vmatprep.subr.mxu0 0.0
    %961 = vmatpush1.msra.mxu0 0.0
    %962 = vmatprep.subr.mxu0 0.0
    %963 = vmatpush1.msra.mxu0 0.0
    %964 = vmatprep.subr.mxu0 0.0
    %965 = vmatpush1.msra.mxu0 0.0
    %966 = vmatprep.subr.mxu0 0.0
    %967 = vmatpush1.msra.mxu0 0.0
    %968 = vmatprep.subr.mxu0 0.0
    %969 = vmatpush1.msra.mxu0 0.0
    %970 = vmatprep.subr.mxu0 0.0
    %971 = vmatpush1.msra.mxu0 0.0
    %972 = vmatprep.subr.mxu0 0.0
    %973 = vmatpush1.msra.mxu0 0.0
    %974 = vmatprep.subr.mxu0 0.0
    %975 = vmatpush1.msra.mxu0 0.0
    %976 = vmatprep.subr.mxu0 0.0
    %977 = vmatpush1.msra.mxu0 0.0
    %978 = vmatprep.subr.mxu0 0.0
    %979 = vmatpush1.msra.mxu0 0.0
    %980 = vmatprep.subr.mxu0 0.0
    %981 = vmatpush1.msra.mxu0 0.0
    %982 = vmatprep.subr.mxu0 0.0
    %983 = vmatpush1.msra.mxu0 0.0
    %984 = vmatprep.subr.mxu0 0.0
    %985 = vmatpush1.msra.mxu0 0.0
    %986 = vmatprep.subr.mxu0 0.0
    %987 = vmatpush1.msra.mxu0 0.0
    %988 = vmatprep.subr.mxu0 0.0
    %989 = vmatpush1.msra.mxu0 0.0
    %990 = vmatprep.subr.mxu0 0.0
    %991 = vmatpush1.msra.mxu0 0.0
    %992 = vmatprep.subr.mxu0 0.0
    %993 = vmatpush1.msra.mxu0 0.0
    %994 = vmatprep.subr.mxu0 0.0
    %995 = vmatpush1.msra.mxu0 0.0
    %996 = vmatprep.subr.mxu0 0.0
    %997 = vmatpush1.msra.mxu0 0.0
    %998 = vmatprep.subr.mxu0 0.0
    %999 = vmatpush1.msra.mxu0 0.0
    %1000 = vmatprep.subr.mxu0 0.0
    %1001 = vmatpush1.msra.mxu0 0.0
    %1002 = vmatprep.subr.mxu0 0.0
    %1003 = vmatpush1.msra.mxu0 0.0
    %1004 = vmatprep.subr.mxu0 0.0
    %1005 = vmatpush1.msra.mxu0 0.0
    %1006 = vmatprep.subr.mxu0 0.0
    %1007 = vmatpush1.msra.mxu0 0.0
    %1008 = vmatprep.subr.mxu0 0.0
    %1009 = vmatpush1.msra.mxu0 0.0
    %1010 = vmatprep.subr.mxu0 0.0
    %1011 = vmatpush1.msra.mxu0 0.0
    %1012 = vmatprep.subr.mxu0 0.0
    %1013 = vmatpush1.msra.mxu0 0.0
    %1014 = vmatprep.subr.mxu0 0.0
    %1015 = vmatpush1.msra.mxu0 0.0
    %1016 = vmatprep.mubr.f32.mxu0 0.0
    %1017 = vmatmul.mubr.f32.gmra.mrb[0].mxu0 %v950
    %v1018 = vpop.f32.mrb[0].mxu0
    %v1019 = vadd.f32 0.0, %v1018
    %v1020 = vpop.f32.mrb[0].mxu0
    %1021 = vdwg.mxu0
    %1023 = vrot.lane.b32.xlu0 %v1019, 24
    %v1024 = vpop.permute.xlu0 %1023
    %vm1026 = vcmask 261312
    %1027 = vst.msk [vmem:[#allocation2] sm:$0xff] %vm1026, %v1024
    %v1028 = vld [vmem:[#allocation2] sm:$0xff]
    %v1029 = vld [vmem:[%s4] sm:$0xff]
    %v1030 = vld [vmem:[%s4 + $0x8] sm:$0xff]
    %v1031 = vld [vmem:[%s4 + $0x10] sm:$0xff]
    %v1032 = vld [vmem:[%s4 + $0x18] sm:$0xff]
    %v1033 = vld [vmem:[%s4 + $0x20] sm:$0xff]
    %v1034 = vld [vmem:[%s4 + $0x28] sm:$0xff]
    %v1035 = vld [vmem:[%s4 + $0x30] sm:$0xff]
    %v1036 = vld [vmem:[%s4 + $0x38] sm:$0xff]
    %v1038 = vsel %vm196, %v1028, 0
    %1040 = vmatprep.subr.mxu0 0.0
    %1041 = vmatpush1.msra.mxu0 %v1033
    %1042 = vmatprep.subr.mxu0 0.0
    %1043 = vmatpush1.msra.mxu0 %v1034
    %1044 = vmatprep.subr.mxu0 0.0
    %1045 = vmatpush1.msra.mxu0 %v1035
    %1046 = vmatprep.subr.mxu0 0.0
    %1047 = vmatpush1.msra.mxu0 %v1036
    %1048 = vmatprep.subr.mxu0 0.0
    %1049 = vmatpush1.msra.mxu0 0.0
    %1050 = vmatprep.subr.mxu0 0.0
    %1051 = vmatpush1.msra.mxu0 0.0
    %1052 = vmatprep.subr.mxu0 0.0
    %1053 = vmatpush1.msra.mxu0 0.0
    %1054 = vmatprep.subr.mxu0 0.0
    %1055 = vmatpush1.msra.mxu0 0.0
    %1056 = vmatprep.subr.mxu0 0.0
    %1057 = vmatpush1.msra.mxu0 0.0
    %1058 = vmatprep.subr.mxu0 0.0
    %1059 = vmatpush1.msra.mxu0 0.0
    %1060 = vmatprep.subr.mxu0 0.0
    %1061 = vmatpush1.msra.mxu0 0.0
    %1062 = vmatprep.subr.mxu0 0.0
    %1063 = vmatpush1.msra.mxu0 0.0
    %1064 = vmatprep.subr.mxu0 0.0
    %1065 = vmatpush1.msra.mxu0 0.0
    %1066 = vmatprep.subr.mxu0 0.0
    %1067 = vmatpush1.msra.mxu0 0.0
    %1068 = vmatprep.subr.mxu0 0.0
    %1069 = vmatpush1.msra.mxu0 0.0
    %1070 = vmatprep.subr.mxu0 0.0
    %1071 = vmatpush1.msra.mxu0 0.0
    %1072 = vmatprep.subr.mxu0 0.0
    %1073 = vmatpush1.msra.mxu0 0.0
    %1074 = vmatprep.subr.mxu0 0.0
    %1075 = vmatpush1.msra.mxu0 0.0
    %1076 = vmatprep.subr.mxu0 0.0
    %1077 = vmatpush1.msra.mxu0 0.0
    %1078 = vmatprep.subr.mxu0 0.0
    %1079 = vmatpush1.msra.mxu0 0.0
    %1080 = vmatprep.subr.mxu0 0.0
    %1081 = vmatpush1.msra.mxu0 0.0
    %1082 = vmatprep.subr.mxu0 0.0
    %1083 = vmatpush1.msra.mxu0 0.0
    %1084 = vmatprep.subr.mxu0 0.0
    %1085 = vmatpush1.msra.mxu0 0.0
    %1086 = vmatprep.subr.mxu0 0.0
    %1087 = vmatpush1.msra.mxu0 0.0
    %1088 = vmatprep.subr.mxu0 0.0
    %1089 = vmatpush1.msra.mxu0 0.0
    %1090 = vmatprep.subr.mxu0 0.0
    %1091 = vmatpush1.msra.mxu0 0.0
    %1092 = vmatprep.subr.mxu0 0.0
    %1093 = vmatpush1.msra.mxu0 0.0
    %1094 = vmatprep.subr.mxu0 0.0
    %1095 = vmatpush1.msra.mxu0 0.0
    %1096 = vmatprep.subr.mxu0 0.0
    %1097 = vmatpush1.msra.mxu0 0.0
    %1098 = vmatprep.subr.mxu0 0.0
    %1099 = vmatpush1.msra.mxu0 0.0
    %1100 = vmatprep.subr.mxu0 0.0
    %1101 = vmatpush1.msra.mxu0 0.0
    %1102 = vmatprep.subr.mxu0 0.0
    %1103 = vmatpush1.msra.mxu0 0.0
    %1104 = vmatprep.mubr.f32.mxu0 0.0
    %1105 = vmatmul.mubr.f32.gmra.mrb[0].mxu0 %v1038
    %v1106 = vpop.f32.mrb[0].mxu0
    %v1107 = vadd.f32 0.0, %v1106
    %v1108 = vpop.f32.mrb[0].mxu0
    %1109 = vdwg.mxu0
    %1110 = vmatprep.subr.mxu0 0.0
    %1111 = vmatpush1.msra.mxu0 %v1029
    %1112 = vmatprep.subr.mxu0 0.0
    %1113 = vmatpush1.msra.mxu0 %v1030
    %1114 = vmatprep.subr.mxu0 0.0
    %1115 = vmatpush1.msra.mxu0 %v1031
    %1116 = vmatprep.subr.mxu0 0.0
    %1117 = vmatpush1.msra.mxu0 %v1032
    %1118 = vmatprep.subr.mxu0 0.0
    %1119 = vmatpush1.msra.mxu0 0.0
    %1120 = vmatprep.subr.mxu0 0.0
    %1121 = vmatpush1.msra.mxu0 0.0
    %1122 = vmatprep.subr.mxu0 0.0
    %1123 = vmatpush1.msra.mxu0 0.0
    %1124 = vmatprep.subr.mxu0 0.0
    %1125 = vmatpush1.msra.mxu0 0.0
    %1126 = vmatprep.subr.mxu0 0.0
    %1127 = vmatpush1.msra.mxu0 0.0
    %1128 = vmatprep.subr.mxu0 0.0
    %1129 = vmatpush1.msra.mxu0 0.0
    %1130 = vmatprep.subr.mxu0 0.0
    %1131 = vmatpush1.msra.mxu0 0.0
    %1132 = vmatprep.subr.mxu0 0.0
    %1133 = vmatpush1.msra.mxu0 0.0
    %1134 = vmatprep.subr.mxu0 0.0
    %1135 = vmatpush1.msra.mxu0 0.0
    %1136 = vmatprep.subr.mxu0 0.0
    %1137 = vmatpush1.msra.mxu0 0.0
    %1138 = vmatprep.subr.mxu0 0.0
    %1139 = vmatpush1.msra.mxu0 0.0
    %1140 = vmatprep.subr.mxu0 0.0
    %1141 = vmatpush1.msra.mxu0 0.0
    %1142 = vmatprep.subr.mxu0 0.0
    %1143 = vmatpush1.msra.mxu0 0.0
    %1144 = vmatprep.subr.mxu0 0.0
    %1145 = vmatpush1.msra.mxu0 0.0
    %1146 = vmatprep.subr.mxu0 0.0
    %1147 = vmatpush1.msra.mxu0 0.0
    %1148 = vmatprep.subr.mxu0 0.0
    %1149 = vmatpush1.msra.mxu0 0.0
    %1150 = vmatprep.subr.mxu0 0.0
    %1151 = vmatpush1.msra.mxu0 0.0
    %1152 = vmatprep.subr.mxu0 0.0
    %1153 = vmatpush1.msra.mxu0 0.0
    %1154 = vmatprep.subr.mxu0 0.0
    %1155 = vmatpush1.msra.mxu0 0.0
    %1156 = vmatprep.subr.mxu0 0.0
    %1157 = vmatpush1.msra.mxu0 0.0
    %1158 = vmatprep.subr.mxu0 0.0
    %1159 = vmatpush1.msra.mxu0 0.0
    %1160 = vmatprep.subr.mxu0 0.0
    %1161 = vmatpush1.msra.mxu0 0.0
    %1162 = vmatprep.subr.mxu0 0.0
    %1163 = vmatpush1.msra.mxu0 0.0
    %1164 = vmatprep.subr.mxu0 0.0
    %1165 = vmatpush1.msra.mxu0 0.0
    %1166 = vmatprep.subr.mxu0 0.0
    %1167 = vmatpush1.msra.mxu0 0.0
    %1168 = vmatprep.subr.mxu0 0.0
    %1169 = vmatpush1.msra.mxu0 0.0
    %1170 = vmatprep.subr.mxu0 0.0
    %1171 = vmatpush1.msra.mxu0 0.0
    %1172 = vmatprep.subr.mxu0 0.0
    %1173 = vmatpush1.msra.mxu0 0.0
    %1174 = vmatprep.mubr.f32.mxu0 0.0
    %1175 = vmatmul.mubr.f32.gmra.mrb[0].mxu0 %v271
    %v1176 = vpop.f32.mrb[0].mxu0
    %v1177 = vadd.f32 %v1107, %v1176
    %v1178 = vpop.f32.mrb[0].mxu0
    %1179 = vdwg.mxu0
    %v1180 = vld [vmem:[%s4 + $0x40] sm:$0x1]
    %v1181 = vlaneseq
    %v1182 = vshrl.u32 %v1181, 7
    %v1183 = vsub.s32 0, %v1182
    %v1184 = vrot.slane %v1180, %v1183
    %v1185 = vadd.f32 %v1177, %v1184
    %v1186 = vmax.f32 %v1185, 0.0
    %1187 = vst.msk [vmem:[#allocation3] sm:$0xff] %vm30, %v1186
    // Predicated region
    $region22: #{tpu_custom_call.1} parent=1 // pred_check
      _
    $region23: #{tpu_custom_call.1} parent=1 // pred_check_branch
      %1189 = sbr.rel (0) target = $region25
    $region24: #{tpu_custom_call.1} parent=1 // pred_region
      %s1191 = ssub.s32 128, 128
      %1192 = vsyncadd [#allocation4], %s1191
      %s1194 = sshll.u32 [#allocation3], 4
      %s1195 = int_to_ptr.vmem [resolvable:$true] %s1194
      %1197 = dma.vmem_to_hbm [thread:$0]  %s1195, 128, %s5, [#allocation4]
    $region25: #{tpu_custom_call.1} parent=1 // pred_fallthru
      _
    // Predicated region
    $region26: #{tpu_custom_call.1} parent=1 // pred_check
      _
    $region27: #{tpu_custom_call.1} parent=1 // pred_check_branch
      %1199 = sbr.rel (0) target = $region29
    $region28: #{tpu_custom_call.1} parent=1 // pred_region
      %1200 = dma.done [#allocation4], 128
    $region29: #{tpu_custom_call.1} parent=1 // pred_fallthru
      _
    %1201 = vsyncpa [#allocation4], 1

</llo_original>
